<compile_context>
chip_gen: v5e
topology: v5e:2x2
jax: 0.10.0
libtpu: 0.0.40
codegen_flags: <defaults>
</compile_context>

<pallas_src>
import jax
import jax.numpy as jnp
from jax.experimental import pallas as pl
from jax.experimental.pallas import tpu as pltpu

LATENT = 20
HEAD_COLS = 2 * LATENT    # mu | logvar columns in the fused output slab
HIDDEN_PAD = 512          # 400 padded to a multiple of 128 (lane-dense h1/h3)
TB_MAX = 2048             # large-batch tile cap


def _round_up(x, m):
    return -(-x // m) * m


def _vae_kernel(xu_ref, eps_ref,
                w1_ref, b1_ref,
                whead_ref, bhead_ref,
                w3_ref, b3_ref,
                w4_ref, b4_ref,
                out_ref):
    x = xu_ref[...]                                      # [TB, D] f32

    # ---- encode: h1 = relu(x @ W1 + b1)  (W1 may be bf16; f32 accumulate) --
    h1 = jnp.dot(x.astype(w1_ref.dtype), w1_ref[...],
                 preferred_element_type=jnp.float32) + b1_ref[...]
    h1 = jnp.maximum(h1, 0.0)                            # [TB, 512] f32

    # ---- fused mu|logvar head: one lane-dense matmul, kept f32 -------------
    head = jnp.dot(h1.astype(whead_ref.dtype), whead_ref[...],
                   preferred_element_type=jnp.float32) + bhead_ref[...]
    mu = head[:, :LATENT]                                # [TB, 20]
    logvar = head[:, LATENT:HEAD_COLS]                   # [TB, 20]

    # ---- reparameterize: z = mu + eps * exp(0.5*logvar)  (exp on EUP) ------
    z = mu + eps_ref[...] * jnp.exp(0.5 * logvar)        # [TB, 20] f32

    # ---- decode: sigmoid(relu(z @ W3 + b3) @ W4 + b4) ----------------------
    h3 = jnp.dot(z.astype(w3_ref.dtype), w3_ref[...],
                 preferred_element_type=jnp.float32) + b3_ref[...]
    h3 = jnp.maximum(h3, 0.0)                            # [TB, 512] f32
    logits = jnp.dot(h3.astype(w4_ref.dtype), w4_ref[...],
                     preferred_element_type=jnp.float32) + b4_ref[...]
    # exact sigmoid via a single EUP tanh (no approx-reciprocal error)
    recon = 0.5 * (1.0 + jnp.tanh(0.5 * logits))         # [TB, SLAB]

    # ---- single fused lane-dense output slab: [mu | logvar | recon] --------
    col = jax.lax.broadcasted_iota(jnp.int32, head.shape, 1)
    out_ref[...] = jnp.where(col < HEAD_COLS, head, recon).astype(out_ref.dtype)


def init_params(key, state_dim, action_dim):
    """Logical params mimicking nn.Linear init, stored transposed [in, out]."""
    D = state_dim + action_dim
    dims = [
        ("w1", "b1", D, 400),
        ("w21", "b21", 400, LATENT),
        ("w22", "b22", 400, LATENT),
        ("w3", "b3", LATENT, 400),
        ("w4", "b4", 400, D),
    ]
    params = {}
    for wname, bname, fan_in, fan_out in dims:
        key, kw, kb = jax.random.split(key, 3)
        bound = 1.0 / jnp.sqrt(jnp.float32(fan_in))
        params[wname] = jax.random.uniform(
            kw, (fan_in, fan_out), jnp.float32, -bound, bound)
        params[bname] = jax.random.uniform(
            kb, (1, fan_out), jnp.float32, -bound, bound)
    return params


def prepare_params(params, state_dim, action_dim, matmul_dtype=jnp.bfloat16):
    """Pad hidden 400->512, fuse mu/logvar heads, place w4 into the fused slab.

    matmul_dtype applies only to the two big matmuls (w1, w4); whead / w3 and
    all biases stay f32 so mu/logvar (KL stats) keep full precision.
    """
    D = state_dim + action_dim
    slab_w = _round_up(HEAD_COLS + D, 128)   # lane-dense fused output width

    def place(a, rows, cols, col_off=0):
        out = jnp.zeros((rows, cols), a.dtype)
        return out.at[:a.shape[0], col_off:col_off + a.shape[1]].set(a)

    w1 = place(params["w1"], D, HIDDEN_PAD).astype(matmul_dtype)
    b1 = place(params["b1"], 1, HIDDEN_PAD)
    whead = place(jnp.concatenate([params["w21"], params["w22"]], axis=1),
                  HIDDEN_PAD, slab_w)                       # f32
    bhead = place(jnp.concatenate([params["b21"], params["b22"]], axis=1),
                  1, slab_w)
    w3 = place(params["w3"], LATENT, HIDDEN_PAD)            # f32 (tiny K=20)
    b3 = place(params["b3"], 1, HIDDEN_PAD)
    # recon weights live at columns HEAD_COLS : HEAD_COLS+D of the slab
    w4 = place(params["w4"], HIDDEN_PAD, slab_w,
               col_off=HEAD_COLS).astype(matmul_dtype)
    b4 = place(params["b4"], 1, slab_w, col_off=HEAD_COLS)

    return dict(w1=w1, b1=b1, whead=whead, bhead=bhead,
                w3=w3, b3=b3, w4=w4, b4=b4)


def vae_forward(xu, eps, padded_params, state_dim, action_dim):
    """xu: [B, state_dim+action_dim], eps: [B, 20]. Returns (recon, mu, logvar)."""
    B, D = xu.shape
    assert D == state_dim + action_dim
    p = padded_params
    slab_w = p["whead"].shape[1]

    # --- batch tiling: >=2 grid steps when B >= 16 (both TCs on v7x),
    #     tile capped at TB_MAX; TB chosen to minimize padding.
    nsteps = max(pl.cdiv(B, TB_MAX), 2) if B >= 16 else 1
    TB = _round_up(pl.cdiv(max(B, 8), nsteps), 8)
    Bp = nsteps * TB
    if Bp != B:
        xu = jnp.pad(xu, ((0, Bp - B), (0, 0)))
        eps = jnp.pad(eps, ((0, Bp - B), (0, 0)))

    weight_args = (p["w1"], p["b1"], p["whead"], p["bhead"],
                   p["w3"], p["b3"], p["w4"], p["b4"])

    def batch_spec(feat):
        return pl.BlockSpec((TB, feat), lambda i: (i, 0))

    def resident(a):   # weights/biases: same block every step -> stay in VMEM
        return pl.BlockSpec(a.shape, lambda i: (0, 0))

    flops = 2 * Bp * (D * HIDDEN_PAD + HIDDEN_PAD * slab_w
                      + LATENT * HIDDEN_PAD + HIDDEN_PAD * slab_w)
    transcendentals = Bp * (LATENT + slab_w)      # exp(0.5*lv), tanh sigmoid
    bytes_accessed = (sum(int(a.size) * a.dtype.itemsize
                          for a in (xu, eps) + weight_args)
                      + Bp * slab_w * 4)

    out = pl.pallas_call(
        _vae_kernel,
        out_shape=jax.ShapeDtypeStruct((Bp, slab_w), jnp.float32),
        grid=(nsteps,),
        in_specs=[batch_spec(D), batch_spec(LATENT)]
                 + [resident(a) for a in weight_args],
        out_specs=pl.BlockSpec((TB, slab_w), lambda i: (i, 0)),
        compiler_params=pltpu.CompilerParams(
            dimension_semantics=("parallel",),
            vmem_limit_bytes=40 * 1024 * 1024),
        cost_estimate=pl.CostEstimate(
            flops=flops,
            transcendentals=transcendentals,
            bytes_accessed=bytes_accessed),
    )(xu, eps, *weight_args)

    mu = out[:B, :LATENT]
    logvar = out[:B, LATENT:HEAD_COLS]
    recon = out[:B, HEAD_COLS:HEAD_COLS + D]
    return recon, mu, logvar


if __name__ == "__main__":
    state_dim, action_dim = 12, 4
    batch = 8
    D = state_dim + action_dim

    key = jax.random.PRNGKey(0)
    kp, kx, ke = jax.random.split(key, 3)
    params = init_params(kp, state_dim, action_dim)
    xu = jax.random.normal(kx, (batch, D), jnp.float32)
    eps = jax.random.normal(ke, (batch, LATENT), jnp.float32)  # reparam noise

    # pure-JAX reference on the unpadded logical params (same eps)
    def ref(xu, eps, p):
        h1 = jnp.maximum(xu @ p["w1"] + p["b1"], 0.0)
        mu = h1 @ p["w21"] + p["b21"]
        lv = h1 @ p["w22"] + p["b22"]
        z = mu + eps * jnp.exp(0.5 * lv)
        h3 = jnp.maximum(z @ p["w3"] + p["b3"], 0.0)
        return 1.0 / (1.0 + jnp.exp(-(h3 @ p["w4"] + p["b4"]))), mu, lv

    r_ref, mu_ref, lv_ref = ref(xu, eps, params)

    # --- full-f32 weights path (tight numerics) -----------------------------
    pp32 = prepare_params(params, state_dim, action_dim, jnp.float32)
    recon, mu, logvar = jax.block_until_ready(
        vae_forward(xu, eps, pp32, state_dim, action_dim))
    assert recon.shape == (batch, D)
    assert mu.shape == (batch, LATENT) and logvar.shape == (batch, LATENT)
    assert jnp.allclose(mu, mu_ref, atol=1e-4)
    assert jnp.allclose(logvar, lv_ref, atol=1e-4)
    assert jnp.allclose(recon, r_ref, atol=1e-4)

    # --- default path: bf16 w1/w4, f32 head / accumulate --------------------
    pp16 = prepare_params(params, state_dim, action_dim)   # bf16 default
    recon16, mu16, lv16 = jax.block_until_ready(
        vae_forward(xu, eps, pp16, state_dim, action_dim))
    assert jnp.allclose(mu16, mu_ref, atol=3e-2)
    assert jnp.allclose(lv16, lv_ref, atol=3e-2)
    assert jnp.allclose(recon16, r_ref, atol=3e-2)

    print("KERNEL_OK")
</pallas_src>

<mosaic_0001>
module attributes {stable_mosaic.version = 11 : i64} {
  func.func @_vae_kernel(%arg0: i32, %arg1: memref<8x16xf32, #tpu.memory_space<vmem>>, %arg2: memref<8x20xf32, #tpu.memory_space<vmem>>, %arg3: memref<16x512xf32, #tpu.memory_space<vmem>>, %arg4: memref<1x512xf32, #tpu.memory_space<vmem>>, %arg5: memref<512x128xf32, #tpu.memory_space<vmem>>, %arg6: memref<1x128xf32, #tpu.memory_space<vmem>>, %arg7: memref<20x512xf32, #tpu.memory_space<vmem>>, %arg8: memref<1x512xf32, #tpu.memory_space<vmem>>, %arg9: memref<512x128xf32, #tpu.memory_space<vmem>>, %arg10: memref<1x128xf32, #tpu.memory_space<vmem>>, %arg11: memref<8x128xf32, #tpu.memory_space<vmem>>) attributes {dimension_semantics = [#tpu.dimension_semantics<parallel>], iteration_bounds = array<i64: 1>, scalar_prefetch = 0 : i64, scratch_operands = 0 : i64, tpu.core_type = #tpu.core_type<tc>, window_params = [{transform_indices = @transform_0, window_bounds = array<i64: 8, 16>}, {transform_indices = @transform_1, window_bounds = array<i64: 8, 20>}, {pipeline_mode = #tpu.pipeline_mode<synchronous>, transform_indices = @transform_2, window_bounds = array<i64: 16, 512>}, {pipeline_mode = #tpu.pipeline_mode<synchronous>, transform_indices = @transform_3, window_bounds = array<i64: 1, 512>}, {pipeline_mode = #tpu.pipeline_mode<synchronous>, transform_indices = @transform_4, window_bounds = array<i64: 512, 128>}, {pipeline_mode = #tpu.pipeline_mode<synchronous>, transform_indices = @transform_5, window_bounds = array<i64: 1, 128>}, {pipeline_mode = #tpu.pipeline_mode<synchronous>, transform_indices = @transform_6, window_bounds = array<i64: 20, 512>}, {pipeline_mode = #tpu.pipeline_mode<synchronous>, transform_indices = @transform_7, window_bounds = array<i64: 1, 512>}, {pipeline_mode = #tpu.pipeline_mode<synchronous>, transform_indices = @transform_8, window_bounds = array<i64: 512, 128>}, {pipeline_mode = #tpu.pipeline_mode<synchronous>, transform_indices = @transform_9, window_bounds = array<i64: 1, 128>}, {transform_indices = @transform_10, window_bounds = array<i64: 8, 128>}]} {
    %c0 = arith.constant 0 : index
    %c0_0 = arith.constant 0 : index
    %0 = vector.load %arg1[%c0, %c0_0] : memref<8x16xf32, #tpu.memory_space<vmem>>, vector<8x16xf32>
    %c0_1 = arith.constant 0 : index
    %c0_2 = arith.constant 0 : index
    %1 = vector.load %arg3[%c0_1, %c0_2] : memref<16x512xf32, #tpu.memory_space<vmem>>, vector<16x512xf32>
    %cst = arith.constant dense<0.000000e+00> : vector<8x512xf32>
    %2 = tpu.matmul %0, %1, %cst {dimension_numbers = #tpu.dot_dimension_numbers<[1], [0], [0], [1], [0, 0, 1, 1], [], []>} : vector<8x16xf32>, vector<16x512xf32>, vector<8x512xf32> -> vector<8x512xf32>
    %c0_3 = arith.constant 0 : index
    %c0_4 = arith.constant 0 : index
    %3 = vector.load %arg4[%c0_3, %c0_4] : memref<1x512xf32, #tpu.memory_space<vmem>>, vector<1x512xf32>
    %4 = vector.broadcast %3 : vector<1x512xf32> to vector<8x512xf32>
    %5 = arith.addf %2, %4 : vector<8x512xf32>
    %cst_5 = arith.constant 0.000000e+00 : f32
    %6 = vector.broadcast %cst_5 : f32 to vector<8x512xf32>
    %7 = arith.maximumf %5, %6 : vector<8x512xf32>
    %c0_6 = arith.constant 0 : index
    %c0_7 = arith.constant 0 : index
    %8 = vector.load %arg5[%c0_6, %c0_7] : memref<512x128xf32, #tpu.memory_space<vmem>>, vector<512x128xf32>
    %cst_8 = arith.constant dense<0.000000e+00> : vector<8x128xf32>
    %9 = tpu.matmul %7, %8, %cst_8 {dimension_numbers = #tpu.dot_dimension_numbers<[1], [0], [0], [1], [0, 0, 1, 1], [], []>} : vector<8x512xf32>, vector<512x128xf32>, vector<8x128xf32> -> vector<8x128xf32>
    %c0_9 = arith.constant 0 : index
    %c0_10 = arith.constant 0 : index
    %10 = vector.load %arg6[%c0_9, %c0_10] : memref<1x128xf32, #tpu.memory_space<vmem>>, vector<1x128xf32>
    %11 = vector.broadcast %10 : vector<1x128xf32> to vector<8x128xf32>
    %12 = arith.addf %9, %11 : vector<8x128xf32>
    %13 = vector.extract_strided_slice %12 {offsets = [0, 0], sizes = [8, 20], strides = [1, 1]} : vector<8x128xf32> to vector<8x20xf32>
    %14 = vector.extract_strided_slice %12 {offsets = [0, 20], sizes = [8, 20], strides = [1, 1]} : vector<8x128xf32> to vector<8x20xf32>
    %c0_11 = arith.constant 0 : index
    %c0_12 = arith.constant 0 : index
    %15 = vector.load %arg2[%c0_11, %c0_12] : memref<8x20xf32, #tpu.memory_space<vmem>>, vector<8x20xf32>
    %cst_13 = arith.constant 5.000000e-01 : f32
    %16 = vector.broadcast %cst_13 : f32 to vector<8x20xf32>
    %17 = arith.mulf %16, %14 : vector<8x20xf32>
    %18 = math.exp %17 : vector<8x20xf32>
    %19 = arith.mulf %15, %18 : vector<8x20xf32>
    %20 = arith.addf %13, %19 : vector<8x20xf32>
    %c0_14 = arith.constant 0 : index
    %c0_15 = arith.constant 0 : index
    %21 = vector.load %arg7[%c0_14, %c0_15] : memref<20x512xf32, #tpu.memory_space<vmem>>, vector<20x512xf32>
    %cst_16 = arith.constant dense<0.000000e+00> : vector<8x512xf32>
    %22 = tpu.matmul %20, %21, %cst_16 {dimension_numbers = #tpu.dot_dimension_numbers<[1], [0], [0], [1], [0, 0, 1, 1], [], []>} : vector<8x20xf32>, vector<20x512xf32>, vector<8x512xf32> -> vector<8x512xf32>
    %c0_17 = arith.constant 0 : index
    %c0_18 = arith.constant 0 : index
    %23 = vector.load %arg8[%c0_17, %c0_18] : memref<1x512xf32, #tpu.memory_space<vmem>>, vector<1x512xf32>
    %24 = vector.broadcast %23 : vector<1x512xf32> to vector<8x512xf32>
    %25 = arith.addf %22, %24 : vector<8x512xf32>
    %cst_19 = arith.constant 0.000000e+00 : f32
    %26 = vector.broadcast %cst_19 : f32 to vector<8x512xf32>
    %27 = arith.maximumf %25, %26 : vector<8x512xf32>
    %c0_20 = arith.constant 0 : index
    %c0_21 = arith.constant 0 : index
    %28 = vector.load %arg9[%c0_20, %c0_21] : memref<512x128xf32, #tpu.memory_space<vmem>>, vector<512x128xf32>
    %cst_22 = arith.constant dense<0.000000e+00> : vector<8x128xf32>
    %29 = tpu.matmul %27, %28, %cst_22 {dimension_numbers = #tpu.dot_dimension_numbers<[1], [0], [0], [1], [0, 0, 1, 1], [], []>} : vector<8x512xf32>, vector<512x128xf32>, vector<8x128xf32> -> vector<8x128xf32>
    %c0_23 = arith.constant 0 : index
    %c0_24 = arith.constant 0 : index
    %30 = vector.load %arg10[%c0_23, %c0_24] : memref<1x128xf32, #tpu.memory_space<vmem>>, vector<1x128xf32>
    %31 = vector.broadcast %30 : vector<1x128xf32> to vector<8x128xf32>
    %32 = arith.addf %29, %31 : vector<8x128xf32>
    %cst_25 = arith.constant 5.000000e-01 : f32
    %33 = vector.broadcast %cst_25 : f32 to vector<8x128xf32>
    %34 = arith.mulf %33, %32 : vector<8x128xf32>
    %35 = math.tanh %34 : vector<8x128xf32>
    %cst_26 = arith.constant 1.000000e+00 : f32
    %36 = vector.broadcast %cst_26 : f32 to vector<8x128xf32>
    %37 = arith.addf %36, %35 : vector<8x128xf32>
    %cst_27 = arith.constant 5.000000e-01 : f32
    %38 = vector.broadcast %cst_27 : f32 to vector<8x128xf32>
    %39 = arith.mulf %38, %37 : vector<8x128xf32>
    %40 = tpu.iota {dimensions = array<i32: 1>} : vector<8x128xi32>
    %c40_i32 = arith.constant 40 : i32
    %41 = vector.broadcast %c40_i32 : i32 to vector<8x128xi32>
    %42 = arith.cmpi slt, %40, %41 : vector<8x128xi32>
    %43 = arith.select %42, %12, %39 : vector<8x128xi1>, vector<8x128xf32>
    %c0_28 = arith.constant 0 : index
    %c0_29 = arith.constant 0 : index
    %44 = vector.load %arg11[%c0_28, %c0_29] : memref<8x128xf32, #tpu.memory_space<vmem>>, vector<8x128xf32>
    tpu.vector_store %arg11[%c0_28, %c0_29], %43 {strides = array<i32>} : memref<8x128xf32, #tpu.memory_space<vmem>>, vector<8x128xf32>,
    return
  }
  func.func @transform_0(%arg0: i32) -> (i32, i32) {
    %c0_i32 = arith.constant 0 : i32
    %c0_i32_0 = arith.constant 0 : i32
    return %arg0, %c0_i32 : i32, i32
  }
  func.func @transform_1(%arg0: i32) -> (i32, i32) {
    %c0_i32 = arith.constant 0 : i32
    %c0_i32_0 = arith.constant 0 : i32
    return %arg0, %c0_i32 : i32, i32
  }
  func.func @transform_2(%arg0: i32) -> (i32, i32) {
    %c0_i32 = arith.constant 0 : i32
    %c0_i32_0 = arith.constant 0 : i32
    %c0_i32_1 = arith.constant 0 : i32
    return %c0_i32, %c0_i32_0 : i32, i32
  }
  func.func @transform_3(%arg0: i32) -> (i32, i32) {
    %c0_i32 = arith.constant 0 : i32
    %c0_i32_0 = arith.constant 0 : i32
    %c0_i32_1 = arith.constant 0 : i32
    return %c0_i32, %c0_i32_0 : i32, i32
  }
  func.func @transform_4(%arg0: i32) -> (i32, i32) {
    %c0_i32 = arith.constant 0 : i32
    %c0_i32_0 = arith.constant 0 : i32
    %c0_i32_1 = arith.constant 0 : i32
    return %c0_i32, %c0_i32_0 : i32, i32
  }
  func.func @transform_5(%arg0: i32) -> (i32, i32) {
    %c0_i32 = arith.constant 0 : i32
    %c0_i32_0 = arith.constant 0 : i32
    %c0_i32_1 = arith.constant 0 : i32
    return %c0_i32, %c0_i32_0 : i32, i32
  }
  func.func @transform_6(%arg0: i32) -> (i32, i32) {
    %c0_i32 = arith.constant 0 : i32
    %c0_i32_0 = arith.constant 0 : i32
    %c0_i32_1 = arith.constant 0 : i32
    return %c0_i32, %c0_i32_0 : i32, i32
  }
  func.func @transform_7(%arg0: i32) -> (i32, i32) {
    %c0_i32 = arith.constant 0 : i32
    %c0_i32_0 = arith.constant 0 : i32
    %c0_i32_1 = arith.constant 0 : i32
    return %c0_i32, %c0_i32_0 : i32, i32
  }
  func.func @transform_8(%arg0: i32) -> (i32, i32) {
    %c0_i32 = arith.constant 0 : i32
    %c0_i32_0 = arith.constant 0 : i32
    %c0_i32_1 = arith.constant 0 : i32
    return %c0_i32, %c0_i32_0 : i32, i32
  }
  func.func @transform_9(%arg0: i32) -> (i32, i32) {
    %c0_i32 = arith.constant 0 : i32
    %c0_i32_0 = arith.constant 0 : i32
    %c0_i32_1 = arith.constant 0 : i32
    return %c0_i32, %c0_i32_0 : i32, i32
  }
  func.func @transform_10(%arg0: i32) -> (i32, i32) {
    %c0_i32 = arith.constant 0 : i32
    %c0_i32_0 = arith.constant 0 : i32
    return %arg0, %c0_i32 : i32, i32
  }
}

</mosaic_0001>

<llo_original>
// kernel: tpu_custom_call.1
$region0: #{tpu_custom_call.1}
  #allocation0 [shape = 'u32[]', space=smem, size = 0x4, offset = 0x4, fixed_abs, tag = 'smem constant byte address 0x4 - core index']
  #allocation1 [shape = 'u32[72,128]{1,0:T(1,128)}', space=vmem, size = 0x9000, scoped, tag = 'internal scratch']
  %s0 = inlined_call_operand.hbm [shape: f32[8,16], index: 0, kind: input, shape index: {}]
  %s1 = inlined_call_operand.hbm [shape: f32[8,20], index: 1, kind: input, shape index: {}]
  %s2 = inlined_call_operand.hbm [shape: f32[16,512], index: 2, kind: input, shape index: {}]
  %s3 = inlined_call_operand.hbm [shape: f32[1,512], index: 3, kind: input, shape index: {}]
  %s4 = inlined_call_operand.hbm [shape: f32[512,128], index: 4, kind: input, shape index: {}]
  %s5 = inlined_call_operand.vmem [shape: f32[1,128], index: 5, kind: input, shape index: {}]
  %s6 = inlined_call_operand.hbm [shape: f32[20,512], index: 6, kind: input, shape index: {}]
  %s7 = inlined_call_operand.vmem [shape: f32[1,512], index: 7, kind: input, shape index: {}]
  %s8 = inlined_call_operand.hbm [shape: f32[512,128], index: 8, kind: input, shape index: {}]
  %s9 = inlined_call_operand.vmem [shape: f32[1,128], index: 9, kind: input, shape index: {}]
  %s10 = inlined_call_operand.hbm [shape: f32[8,128], index: 10, kind: output, shape index: {}]
  %s11 = sld [smem:[#allocation0]]
  $region78: #{tpu_custom_call.1} parent=0
    _
  %s13 = ssub.s32 1, %s11
  %s14 = scalar_select 0, %s13, %s11
  $region1: #{tpu_custom_call.1} parent=0
    #allocation2 [shape = 'u8[4096]{0}', space=vmem, size = 0x1000, scoped, tag = 'input window, operand 0, single buffered']
    #allocation3 [shape = 's32[1]{0}', space=sflag, size = 0x4, scoped, tag = 'scoped memory for tpu_custom_call.1']
    #allocation4 [shape = 's32[1]{0}', space=sflag, size = 0x4, scoped, tag = 'scoped memory for tpu_custom_call.1']
    #allocation5 [shape = 'u8[4096]{0}', space=vmem, size = 0x1000, scoped, tag = 'input window, operand 1, single buffered']
    #allocation6 [shape = 's32[1]{0}', space=sflag, size = 0x4, scoped, tag = 'scoped memory for tpu_custom_call.1']
    #allocation7 [shape = 'u8[32768]{0}', space=vmem, size = 0x8000, scoped, tag = 'input window, operand 2, single buffered']
    #allocation8 [shape = 'u8[2048]{0}', space=vmem, size = 0x800, scoped, tag = 'input window, operand 3, single buffered']
    #allocation9 [shape = 's32[1]{0}', space=sflag, size = 0x4, scoped, tag = 'scoped memory for tpu_custom_call.1']
    #allocation10 [shape = 'u8[262144]{0}', space=vmem, size = 0x40000, scoped, tag = 'input window, operand 4, single buffered']
    #allocation11 [shape = 'u8[49152]{0}', space=vmem, size = 0xc000, scoped, tag = 'input window, operand 6, single buffered']
    #allocation12 [shape = 's32[1]{0}', space=sflag, size = 0x4, scoped, tag = 'scoped memory for tpu_custom_call.1']
    #allocation13 [shape = 'u8[262144]{0}', space=vmem, size = 0x40000, scoped, tag = 'input window, operand 8, single buffered']
    #allocation14 [shape = 'u8[4096]{0}', space=vmem, size = 0x1000, scoped, tag = 'output window, operand 0, single buffered']
    %15 = vsyncpa [#allocation3], 0
    %16 = vsyncpa [#allocation6], 0
    %17 = vsyncpa [#allocation9], 0
    %18 = vsyncpa [#allocation12], 0
    %19 = vsyncpa [#allocation4], 0
    // Predicated region
    $region2: #{tpu_custom_call.1} parent=1 // pred_check
      _
    $region3: #{tpu_custom_call.1} parent=1 // pred_check_branch
      %21 = sbr.rel (0) target = $region5
    $region4: #{tpu_custom_call.1} parent=1 // pred_region
      %23 = vsyncadd [#allocation3], 0
      %s25 = sshll.u32 %s0, 4
      %s26 = int_to_ptr.hbm [resolvable:$true] %s25
      %s27 = sshll.u32 [#allocation2], 4
      %s28 = int_to_ptr.vmem [resolvable:$true] %s27
      %30 = dma.hbm_to_vmem [thread:$0]  %s26, 128, %s28, [#allocation3]
    $region5: #{tpu_custom_call.1} parent=1 // pred_fallthru
      _
    // Predicated region
    $region6: #{tpu_custom_call.1} parent=1 // pred_check
      _
    $region7: #{tpu_custom_call.1} parent=1 // pred_check_branch
      %32 = sbr.rel (0) target = $region9
    $region8: #{tpu_custom_call.1} parent=1 // pred_region
      %34 = vsyncadd [#allocation6], 0
      %s36 = sshll.u32 %s1, 4
      %s37 = int_to_ptr.hbm [resolvable:$true] %s36
      %s38 = sshll.u32 [#allocation5], 4
      %s39 = int_to_ptr.vmem [resolvable:$true] %s38
      %41 = dma.hbm_to_vmem [thread:$0]  %s37, 128, %s39, [#allocation6]
    $region9: #{tpu_custom_call.1} parent=1 // pred_fallthru
      _
    // Predicated region
    $region10: #{tpu_custom_call.1} parent=1 // pred_check
      _
    $region11: #{tpu_custom_call.1} parent=1 // pred_check_branch
      %43 = sbr.rel (0) target = $region13
    $region12: #{tpu_custom_call.1} parent=1 // pred_region
      %45 = vsyncadd [#allocation6], 0
      %s46 = sshll.u32 %s2, 4
      %s47 = int_to_ptr.hbm [resolvable:$true] %s46
      %s48 = sshll.u32 [#allocation7], 4
      %s49 = int_to_ptr.vmem [resolvable:$true] %s48
      %54 = dma.hbm_to_vmem [thread:$0]  %s47, 1024, %s49, [#allocation6], 512, 512, 32
    $region13: #{tpu_custom_call.1} parent=1 // pred_fallthru
      _
    // Predicated region
    $region14: #{tpu_custom_call.1} parent=1 // pred_check
      _
    $region15: #{tpu_custom_call.1} parent=1 // pred_check_branch
      %56 = sbr.rel (0) target = $region17
    $region16: #{tpu_custom_call.1} parent=1 // pred_region
      %58 = vsyncadd [#allocation9], 0
      %s60 = sshll.u32 %s3, 4
      %s61 = int_to_ptr.hbm [resolvable:$true] %s60
      %s62 = sshll.u32 [#allocation8], 4
      %s63 = int_to_ptr.vmem [resolvable:$true] %s62
      %65 = dma.hbm_to_vmem [thread:$0]  %s61, 64, %s63, [#allocation9]
    $region17: #{tpu_custom_call.1} parent=1 // pred_fallthru
      _
    // Predicated region
    $region18: #{tpu_custom_call.1} parent=1 // pred_check
      _
    $region19: #{tpu_custom_call.1} parent=1 // pred_check_branch
      %67 = sbr.rel (0) target = $region21
    $region20: #{tpu_custom_call.1} parent=1 // pred_region
      %69 = vsyncadd [#allocation9], 0
      %s70 = sshll.u32 %s4, 4
      %s71 = int_to_ptr.hbm [resolvable:$true] %s70
      %s72 = sshll.u32 [#allocation10], 4
      %s73 = int_to_ptr.vmem [resolvable:$true] %s72
      %78 = dma.hbm_to_vmem [thread:$0]  %s71, 8192, %s73, [#allocation9], 128, 128, 8
    $region21: #{tpu_custom_call.1} parent=1 // pred_fallthru
      _
    // Predicated region
    $region22: #{tpu_custom_call.1} parent=1 // pred_check
      _
    $region23: #{tpu_custom_call.1} parent=1 // pred_check_branch
      %80 = sbr.rel (0) target = $region25
    $region24: #{tpu_custom_call.1} parent=1 // pred_region
      _
    $region25: #{tpu_custom_call.1} parent=1 // pred_fallthru
      _
    // Predicated region
    $region26: #{tpu_custom_call.1} parent=1 // pred_check
      _
    $region27: #{tpu_custom_call.1} parent=1 // pred_check_branch
      %82 = sbr.rel (0) target = $region29
    $region28: #{tpu_custom_call.1} parent=1 // pred_region
      %84 = vsyncadd [#allocation12], 0
      %s85 = sshll.u32 %s6, 4
      %s86 = int_to_ptr.hbm [resolvable:$true] %s85
      %s87 = sshll.u32 [#allocation11], 4
      %s88 = int_to_ptr.vmem [resolvable:$true] %s87
      %93 = dma.hbm_to_vmem [thread:$0]  %s86, 1536, %s88, [#allocation12], 512, 512, 32
    $region29: #{tpu_custom_call.1} parent=1 // pred_fallthru
      _
    // Predicated region
    $region30: #{tpu_custom_call.1} parent=1 // pred_check
      _
    $region31: #{tpu_custom_call.1} parent=1 // pred_check_branch
      %95 = sbr.rel (0) target = $region33
    $region32: #{tpu_custom_call.1} parent=1 // pred_region
      _
    $region33: #{tpu_custom_call.1} parent=1 // pred_fallthru
      _
    // Predicated region
    $region34: #{tpu_custom_call.1} parent=1 // pred_check
      _
    $region35: #{tpu_custom_call.1} parent=1 // pred_check_branch
      %97 = sbr.rel (0) target = $region37
    $region36: #{tpu_custom_call.1} parent=1 // pred_region
      %99 = vsyncadd [#allocation12], 0
      %s100 = sshll.u32 %s8, 4
      %s101 = int_to_ptr.hbm [resolvable:$true] %s100
      %s102 = sshll.u32 [#allocation13], 4
      %s103 = int_to_ptr.vmem [resolvable:$true] %s102
      %108 = dma.hbm_to_vmem [thread:$0]  %s101, 8192, %s103, [#allocation12], 128, 128, 8
    $region37: #{tpu_custom_call.1} parent=1 // pred_fallthru
      _
    // Predicated region
    $region38: #{tpu_custom_call.1} parent=1 // pred_check
      _
    $region39: #{tpu_custom_call.1} parent=1 // pred_check_branch
      %110 = sbr.rel (0) target = $region41
    $region40: #{tpu_custom_call.1} parent=1 // pred_region
      _
    $region41: #{tpu_custom_call.1} parent=1 // pred_fallthru
      _
    // Predicated region
    $region42: #{tpu_custom_call.1} parent=1 // pred_check
      _
    $region43: #{tpu_custom_call.1} parent=1 // pred_check_branch
      %112 = sbr.rel (0) target = $region45
    $region44: #{tpu_custom_call.1} parent=1 // pred_region
      %114 = dma.done [#allocation3], 128
    $region45: #{tpu_custom_call.1} parent=1 // pred_fallthru
      _
    // Predicated region
    $region46: #{tpu_custom_call.1} parent=1 // pred_check
      _
    $region47: #{tpu_custom_call.1} parent=1 // pred_check_branch
      %116 = sbr.rel (0) target = $region49
    $region48: #{tpu_custom_call.1} parent=1 // pred_region
      %118 = dma.done [#allocation6], 128
    $region49: #{tpu_custom_call.1} parent=1 // pred_fallthru
      _
    // Predicated region
    $region50: #{tpu_custom_call.1} parent=1 // pred_check
      _
    $region51: #{tpu_custom_call.1} parent=1 // pred_check_branch
      %120 = sbr.rel (0) target = $region53
    $region52: #{tpu_custom_call.1} parent=1 // pred_region
      %122 = dma.done [#allocation6], 1024
    $region53: #{tpu_custom_call.1} parent=1 // pred_fallthru
      _
    // Predicated region
    $region54: #{tpu_custom_call.1} parent=1 // pred_check
      _
    $region55: #{tpu_custom_call.1} parent=1 // pred_check_branch
      %124 = sbr.rel (0) target = $region57
    $region56: #{tpu_custom_call.1} parent=1 // pred_region
      %126 = dma.done [#allocation9], 64
    $region57: #{tpu_custom_call.1} parent=1 // pred_fallthru
      _
    // Predicated region
    $region58: #{tpu_custom_call.1} parent=1 // pred_check
      _
    $region59: #{tpu_custom_call.1} parent=1 // pred_check_branch
      %128 = sbr.rel (0) target = $region61
    $region60: #{tpu_custom_call.1} parent=1 // pred_region
      %130 = dma.done [#allocation9], 8192
    $region61: #{tpu_custom_call.1} parent=1 // pred_fallthru
      _
    // Predicated region
    $region62: #{tpu_custom_call.1} parent=1 // pred_check
      _
    $region63: #{tpu_custom_call.1} parent=1 // pred_check_branch
      %132 = sbr.rel (0) target = $region65
    $region64: #{tpu_custom_call.1} parent=1 // pred_region
      %134 = dma.done [#allocation12], 1536
    $region65: #{tpu_custom_call.1} parent=1 // pred_fallthru
      _
    // Predicated region
    $region66: #{tpu_custom_call.1} parent=1 // pred_check
      _
    $region67: #{tpu_custom_call.1} parent=1 // pred_check_branch
      %136 = sbr.rel (0) target = $region69
    $region68: #{tpu_custom_call.1} parent=1 // pred_region
      %138 = dma.done [#allocation12], 8192
    $region69: #{tpu_custom_call.1} parent=1 // pred_fallthru
      _
    %v139 = vld [vmem:[#allocation2] sm:$0xff]
    %v140 = vld [vmem:[#allocation7] sm:$0xff]
    %v141 = vld [vmem:[#allocation7 + $0x8] sm:$0xff]
    %v142 = vld [vmem:[#allocation7 + $0x10] sm:$0xff]
    %v143 = vld [vmem:[#allocation7 + $0x18] sm:$0xff]
    %v144 = vld [vmem:[#allocation7 + $0x20] sm:$0xff]
    %v145 = vld [vmem:[#allocation7 + $0x28] sm:$0xff]
    %v146 = vld [vmem:[#allocation7 + $0x30] sm:$0xff]
    %v147 = vld [vmem:[#allocation7 + $0x38] sm:$0xff]
    %v148 = vld [vmem:[#allocation8] sm:$0xf]
    %v150 = vperm.slane %v148, 0
    %v151 = vperm.slane %v148, 1
    %v152 = vperm.slane %v148, 2
    %v153 = vperm.slane %v148, 3
    %vm158 = vcmask 130048
    %v160 = vsel %vm158, %v139, 0
    %162 = vmatpush.msra.mxu0 0.0
    %163 = vmatpush.msra.mxu0 0.0
    %164 = vmatpush.msra.mxu0 0.0
    %165 = vmatpush.msra.mxu0 0.0
    %166 = vmatpush.msra.mxu0 0.0
    %167 = vmatpush.msra.mxu0 0.0
    %168 = vmatpush.msra.mxu0 0.0
    %169 = vmatpush.msra.mxu0 0.0
    %170 = vmatpush.msra.mxu0 0.0
    %171 = vmatpush.msra.mxu0 0.0
    %172 = vmatpush.msra.mxu0 0.0
    %173 = vmatpush.msra.mxu0 0.0
    %174 = vmatpush.msra.mxu0 0.0
    %175 = vmatpush.msra.mxu0 0.0
    %176 = vmatpush.msra.mxu0 %v144
    %177 = vmatpush.msra.mxu0 %v140
    %178 = vmatmul.f32.gmra.mxu0 %v160
    %v179 = vpop.f32.mrf.mxu0
    %v180 = vadd.f32 %v150, %v179
    %181 = vdwg.mxu0
    %182 = vmatpush.msra.mxu0 0.0
    %183 = vmatpush.msra.mxu0 0.0
    %184 = vmatpush.msra.mxu0 0.0
    %185 = vmatpush.msra.mxu0 0.0
    %186 = vmatpush.msra.mxu0 0.0
    %187 = vmatpush.msra.mxu0 0.0
    %188 = vmatpush.msra.mxu0 0.0
    %189 = vmatpush.msra.mxu0 0.0
    %190 = vmatpush.msra.mxu0 0.0
    %191 = vmatpush.msra.mxu0 0.0
    %192 = vmatpush.msra.mxu0 0.0
    %193 = vmatpush.msra.mxu0 0.0
    %194 = vmatpush.msra.mxu0 0.0
    %195 = vmatpush.msra.mxu0 0.0
    %196 = vmatpush.msra.mxu0 %v145
    %197 = vmatpush.msra.mxu0 %v141
    %198 = vmatmul.f32.gmra.mxu0 %v160
    %v199 = vpop.f32.mrf.mxu0
    %v200 = vadd.f32 %v151, %v199
    %201 = vdwg.mxu0
    %202 = vmatpush.msra.mxu0 0.0
    %203 = vmatpush.msra.mxu0 0.0
    %204 = vmatpush.msra.mxu0 0.0
    %205 = vmatpush.msra.mxu0 0.0
    %206 = vmatpush.msra.mxu0 0.0
    %207 = vmatpush.msra.mxu0 0.0
    %208 = vmatpush.msra.mxu0 0.0
    %209 = vmatpush.msra.mxu0 0.0
    %210 = vmatpush.msra.mxu0 0.0
    %211 = vmatpush.msra.mxu0 0.0
    %212 = vmatpush.msra.mxu0 0.0
    %213 = vmatpush.msra.mxu0 0.0
    %214 = vmatpush.msra.mxu0 0.0
    %215 = vmatpush.msra.mxu0 0.0
    %216 = vmatpush.msra.mxu0 %v146
    %217 = vmatpush.msra.mxu0 %v142
    %218 = vmatmul.f32.gmra.mxu0 %v160
    %v219 = vpop.f32.mrf.mxu0
    %v220 = vadd.f32 %v152, %v219
    %221 = vdwg.mxu0
    %222 = vmatpush.msra.mxu0 0.0
    %223 = vmatpush.msra.mxu0 0.0
    %224 = vmatpush.msra.mxu0 0.0
    %225 = vmatpush.msra.mxu0 0.0
    %226 = vmatpush.msra.mxu0 0.0
    %227 = vmatpush.msra.mxu0 0.0
    %228 = vmatpush.msra.mxu0 0.0
    %229 = vmatpush.msra.mxu0 0.0
    %230 = vmatpush.msra.mxu0 0.0
    %231 = vmatpush.msra.mxu0 0.0
    %232 = vmatpush.msra.mxu0 0.0
    %233 = vmatpush.msra.mxu0 0.0
    %234 = vmatpush.msra.mxu0 0.0
    %235 = vmatpush.msra.mxu0 0.0
    %236 = vmatpush.msra.mxu0 %v147
    %237 = vmatpush.msra.mxu0 %v143
    %238 = vmatmul.f32.gmra.mxu0 %v160
    %v239 = vpop.f32.mrf.mxu0
    %v240 = vadd.f32 %v153, %v239
    %241 = vdwg.mxu0
    %v242 = vmax.f32 %v180, 0.0
    %v243 = vmax.f32 %v200, 0.0
    %v244 = vmax.f32 %v220, 0.0
    %v245 = vmax.f32 %v240, 0.0
    %v246 = vld [vmem:[#allocation10] sm:$0xff]
    %v247 = vld [vmem:[#allocation10 + $0x8] sm:$0xff]
    %v248 = vld [vmem:[#allocation10 + $0x10] sm:$0xff]
    %v249 = vld [vmem:[#allocation10 + $0x18] sm:$0xff]
    %v250 = vld [vmem:[#allocation10 + $0x20] sm:$0xff]
    %v251 = vld [vmem:[#allocation10 + $0x28] sm:$0xff]
    %v252 = vld [vmem:[#allocation10 + $0x30] sm:$0xff]
    %v253 = vld [vmem:[#allocation10 + $0x38] sm:$0xff]
    %v254 = vld [vmem:[#allocation10 + $0x40] sm:$0xff]
    %v255 = vld [vmem:[#allocation10 + $0x48] sm:$0xff]
    %v256 = vld [vmem:[#allocation10 + $0x50] sm:$0xff]
    %v257 = vld [vmem:[#allocation10 + $0x58] sm:$0xff]
    %v258 = vld [vmem:[#allocation10 + $0x60] sm:$0xff]
    %v259 = vld [vmem:[#allocation10 + $0x68] sm:$0xff]
    %v260 = vld [vmem:[#allocation10 + $0x70] sm:$0xff]
    %v261 = vld [vmem:[#allocation10 + $0x78] sm:$0xff]
    %v262 = vld [vmem:[#allocation10 + $0x80] sm:$0xff]
    %v263 = vld [vmem:[#allocation10 + $0x88] sm:$0xff]
    %v264 = vld [vmem:[#allocation10 + $0x90] sm:$0xff]
    %v265 = vld [vmem:[#allocation10 + $0x98] sm:$0xff]
    %v266 = vld [vmem:[#allocation10 + $0xa0] sm:$0xff]
    %v267 = vld [vmem:[#allocation10 + $0xa8] sm:$0xff]
    %v268 = vld [vmem:[#allocation10 + $0xb0] sm:$0xff]
    %v269 = vld [vmem:[#allocation10 + $0xb8] sm:$0xff]
    %v270 = vld [vmem:[#allocation10 + $0xc0] sm:$0xff]
    %v271 = vld [vmem:[#allocation10 + $0xc8] sm:$0xff]
    %v272 = vld [vmem:[#allocation10 + $0xd0] sm:$0xff]
    %v273 = vld [vmem:[#allocation10 + $0xd8] sm:$0xff]
    %v274 = vld [vmem:[#allocation10 + $0xe0] sm:$0xff]
    %v275 = vld [vmem:[#allocation10 + $0xe8] sm:$0xff]
    %v276 = vld [vmem:[#allocation10 + $0xf0] sm:$0xff]
    %v277 = vld [vmem:[#allocation10 + $0xf8] sm:$0xff]
    %v278 = vld [vmem:[#allocation10 + $0x100] sm:$0xff]
    %v279 = vld [vmem:[#allocation10 + $0x108] sm:$0xff]
    %v280 = vld [vmem:[#allocation10 + $0x110] sm:$0xff]
    %v281 = vld [vmem:[#allocation10 + $0x118] sm:$0xff]
    %v282 = vld [vmem:[#allocation10 + $0x120] sm:$0xff]
    %v283 = vld [vmem:[#allocation10 + $0x128] sm:$0xff]
    %v284 = vld [vmem:[#allocation10 + $0x130] sm:$0xff]
    %v285 = vld [vmem:[#allocation10 + $0x138] sm:$0xff]
    %v286 = vld [vmem:[#allocation10 + $0x140] sm:$0xff]
    %v287 = vld [vmem:[#allocation10 + $0x148] sm:$0xff]
    %v288 = vld [vmem:[#allocation10 + $0x150] sm:$0xff]
    %v289 = vld [vmem:[#allocation10 + $0x158] sm:$0xff]
    %v290 = vld [vmem:[#allocation10 + $0x160] sm:$0xff]
    %v291 = vld [vmem:[#allocation10 + $0x168] sm:$0xff]
    %v292 = vld [vmem:[#allocation10 + $0x170] sm:$0xff]
    %v293 = vld [vmem:[#allocation10 + $0x178] sm:$0xff]
    %v294 = vld [vmem:[#allocation10 + $0x180] sm:$0xff]
    %v295 = vld [vmem:[#allocation10 + $0x188] sm:$0xff]
    %v296 = vld [vmem:[#allocation10 + $0x190] sm:$0xff]
    %v297 = vld [vmem:[#allocation10 + $0x198] sm:$0xff]
    %v298 = vld [vmem:[#allocation10 + $0x1a0] sm:$0xff]
    %v299 = vld [vmem:[#allocation10 + $0x1a8] sm:$0xff]
    %v300 = vld [vmem:[#allocation10 + $0x1b0] sm:$0xff]
    %v301 = vld [vmem:[#allocation10 + $0x1b8] sm:$0xff]
    %v302 = vld [vmem:[#allocation10 + $0x1c0] sm:$0xff]
    %v303 = vld [vmem:[#allocation10 + $0x1c8] sm:$0xff]
    %v304 = vld [vmem:[#allocation10 + $0x1d0] sm:$0xff]
    %v305 = vld [vmem:[#allocation10 + $0x1d8] sm:$0xff]
    %v306 = vld [vmem:[#allocation10 + $0x1e0] sm:$0xff]
    %v307 = vld [vmem:[#allocation10 + $0x1e8] sm:$0xff]
    %v308 = vld [vmem:[#allocation10 + $0x1f0] sm:$0xff]
    %v309 = vld [vmem:[#allocation10 + $0x1f8] sm:$0xff]
    %v310 = vld [vmem:[%s5] sm:$0x1]
    %v312 = vperm.slane %v310, 0
    %314 = vmatpush.msra.mxu0 %v261
    %315 = vmatpush.msra.mxu0 %v260
    %316 = vmatpush.msra.mxu0 %v259
    %317 = vmatpush.msra.mxu0 %v258
    %318 = vmatpush.msra.mxu0 %v257
    %319 = vmatpush.msra.mxu0 %v256
    %320 = vmatpush.msra.mxu0 %v255
    %321 = vmatpush.msra.mxu0 %v254
    %322 = vmatpush.msra.mxu0 %v253
    %323 = vmatpush.msra.mxu0 %v252
    %324 = vmatpush.msra.mxu0 %v251
    %325 = vmatpush.msra.mxu0 %v250
    %326 = vmatpush.msra.mxu0 %v249
    %327 = vmatpush.msra.mxu0 %v248
    %328 = vmatpush.msra.mxu0 %v247
    %329 = vmatpush.msra.mxu0 %v246
    %330 = vmatmul.f32.gmra.mxu0 %v242
    %v331 = vpop.f32.mrf.mxu0
    %v332 = vadd.f32 %v312, %v331
    %333 = vdwg.mxu0
    %334 = vmatpush.msra.mxu0 %v277
    %335 = vmatpush.msra.mxu0 %v276
    %336 = vmatpush.msra.mxu0 %v275
    %337 = vmatpush.msra.mxu0 %v274
    %338 = vmatpush.msra.mxu0 %v273
    %339 = vmatpush.msra.mxu0 %v272
    %340 = vmatpush.msra.mxu0 %v271
    %341 = vmatpush.msra.mxu0 %v270
    %342 = vmatpush.msra.mxu0 %v269
    %343 = vmatpush.msra.mxu0 %v268
    %344 = vmatpush.msra.mxu0 %v267
    %345 = vmatpush.msra.mxu0 %v266
    %346 = vmatpush.msra.mxu0 %v265
    %347 = vmatpush.msra.mxu0 %v264
    %348 = vmatpush.msra.mxu0 %v263
    %349 = vmatpush.msra.mxu0 %v262
    %350 = vmatmul.f32.gmra.mxu0 %v243
    %v351 = vpop.f32.mrf.mxu0
    %v352 = vadd.f32 %v332, %v351
    %353 = vdwg.mxu0
    %354 = vmatpush.msra.mxu0 %v293
    %355 = vmatpush.msra.mxu0 %v292
    %356 = vmatpush.msra.mxu0 %v291
    %357 = vmatpush.msra.mxu0 %v290
    %358 = vmatpush.msra.mxu0 %v289
    %359 = vmatpush.msra.mxu0 %v288
    %360 = vmatpush.msra.mxu0 %v287
    %361 = vmatpush.msra.mxu0 %v286
    %362 = vmatpush.msra.mxu0 %v285
    %363 = vmatpush.msra.mxu0 %v284
    %364 = vmatpush.msra.mxu0 %v283
    %365 = vmatpush.msra.mxu0 %v282
    %366 = vmatpush.msra.mxu0 %v281
    %367 = vmatpush.msra.mxu0 %v280
    %368 = vmatpush.msra.mxu0 %v279
    %369 = vmatpush.msra.mxu0 %v278
    %370 = vmatmul.f32.gmra.mxu0 %v244
    %v371 = vpop.f32.mrf.mxu0
    %v372 = vadd.f32 %v352, %v371
    %373 = vdwg.mxu0
    %374 = vmatpush.msra.mxu0 %v309
    %375 = vmatpush.msra.mxu0 %v308
    %376 = vmatpush.msra.mxu0 %v307
    %377 = vmatpush.msra.mxu0 %v306
    %378 = vmatpush.msra.mxu0 %v305
    %379 = vmatpush.msra.mxu0 %v304
    %380 = vmatpush.msra.mxu0 %v303
    %381 = vmatpush.msra.mxu0 %v302
    %382 = vmatpush.msra.mxu0 %v301
    %383 = vmatpush.msra.mxu0 %v300
    %384 = vmatpush.msra.mxu0 %v299
    %385 = vmatpush.msra.mxu0 %v298
    %386 = vmatpush.msra.mxu0 %v297
    %387 = vmatpush.msra.mxu0 %v296
    %388 = vmatpush.msra.mxu0 %v295
    %389 = vmatpush.msra.mxu0 %v294
    %390 = vmatmul.f32.gmra.mxu0 %v245
    %v391 = vpop.f32.mrf.mxu0
    %v392 = vadd.f32 %v372, %v391
    %393 = vdwg.mxu0
    %v394 = vld [vmem:[#allocation5] sm:$0xff]
    %v395 = vmul.f32 %v392, 0.5
    %v396 = vmul.f32 %v395, 1.442695
    %v397 = vpow.pop %v396
    %399 = vrot.lane.b32.xlu0 %v397, 108
    %v400 = vpop.permute.xlu0 %399
    %v402 = vmul.f32 %v394, %v400
    %v403 = vadd.f32 %v392, %v402
    %v404 = vld [vmem:[#allocation11] sm:$0xff]
    %v405 = vld [vmem:[#allocation11 + $0x8] sm:$0xff]
    %v406 = vld [vmem:[#allocation11 + $0x10] sm:$0xff]
    %v407 = vld [vmem:[#allocation11 + $0x18] sm:$0xff]
    %v408 = vld [vmem:[#allocation11 + $0x20] sm:$0xff]
    %v409 = vld [vmem:[#allocation11 + $0x28] sm:$0xff]
    %v410 = vld [vmem:[#allocation11 + $0x30] sm:$0xff]
    %v411 = vld [vmem:[#allocation11 + $0x38] sm:$0xff]
    %v412 = vld [vmem:[#allocation11 + $0x40] sm:$0xf]
    %v413 = vld [vmem:[#allocation11 + $0x48] sm:$0xf]
    %v414 = vld [vmem:[#allocation11 + $0x50] sm:$0xf]
    %v415 = vld [vmem:[#allocation11 + $0x58] sm:$0xf]
    %v416 = vld [vmem:[%s7] sm:$0xf]
    %v418 = vperm.slane %v416, 0
    %v419 = vperm.slane %v416, 1
    %v420 = vperm.slane %v416, 2
    %v421 = vperm.slane %v416, 3
    %vm426 = vcmask 162816
    %v428 = vsel %vm426, %v403, 0
    %vm430 = vcmask 1043456
    %v432 = vsel %vm430, %v412, 0
    %v435 = vsel %vm430, %v413, 0
    %v438 = vsel %vm430, %v414, 0
    %v441 = vsel %vm430, %v415, 0
    %443 = vmatpush.msra.mxu0 0.0
    %444 = vmatpush.msra.mxu0 0.0
    %445 = vmatpush.msra.mxu0 0.0
    %446 = vmatpush.msra.mxu0 0.0
    %447 = vmatpush.msra.mxu0 0.0
    %448 = vmatpush.msra.mxu0 0.0
    %449 = vmatpush.msra.mxu0 0.0
    %450 = vmatpush.msra.mxu0 0.0
    %451 = vmatpush.msra.mxu0 0.0
    %452 = vmatpush.msra.mxu0 0.0
    %453 = vmatpush.msra.mxu0 0.0
    %454 = vmatpush.msra.mxu0 0.0
    %455 = vmatpush.msra.mxu0 0.0
    %456 = vmatpush.msra.mxu0 %v432
    %457 = vmatpush.msra.mxu0 %v408
    %458 = vmatpush.msra.mxu0 %v404
    %459 = vmatmul.f32.gmra.mxu0 %v428
    %v460 = vpop.f32.mrf.mxu0
    %v461 = vadd.f32 %v418, %v460
    %462 = vdwg.mxu0
    %463 = vmatpush.msra.mxu0 0.0
    %464 = vmatpush.msra.mxu0 0.0
    %465 = vmatpush.msra.mxu0 0.0
    %466 = vmatpush.msra.mxu0 0.0
    %467 = vmatpush.msra.mxu0 0.0
    %468 = vmatpush.msra.mxu0 0.0
    %469 = vmatpush.msra.mxu0 0.0
    %470 = vmatpush.msra.mxu0 0.0
    %471 = vmatpush.msra.mxu0 0.0
    %472 = vmatpush.msra.mxu0 0.0
    %473 = vmatpush.msra.mxu0 0.0
    %474 = vmatpush.msra.mxu0 0.0
    %475 = vmatpush.msra.mxu0 0.0
    %476 = vmatpush.msra.mxu0 %v435
    %477 = vmatpush.msra.mxu0 %v409
    %478 = vmatpush.msra.mxu0 %v405
    %479 = vmatmul.f32.gmra.mxu0 %v428
    %v480 = vpop.f32.mrf.mxu0
    %v481 = vadd.f32 %v419, %v480
    %482 = vdwg.mxu0
    %483 = vmatpush.msra.mxu0 0.0
    %484 = vmatpush.msra.mxu0 0.0
    %485 = vmatpush.msra.mxu0 0.0
    %486 = vmatpush.msra.mxu0 0.0
    %487 = vmatpush.msra.mxu0 0.0
    %488 = vmatpush.msra.mxu0 0.0
    %489 = vmatpush.msra.mxu0 0.0
    %490 = vmatpush.msra.mxu0 0.0
    %491 = vmatpush.msra.mxu0 0.0
    %492 = vmatpush.msra.mxu0 0.0
    %493 = vmatpush.msra.mxu0 0.0
    %494 = vmatpush.msra.mxu0 0.0
    %495 = vmatpush.msra.mxu0 0.0
    %496 = vmatpush.msra.mxu0 %v438
    %497 = vmatpush.msra.mxu0 %v410
    %498 = vmatpush.msra.mxu0 %v406
    %499 = vmatmul.f32.gmra.mxu0 %v428
    %v500 = vpop.f32.mrf.mxu0
    %v501 = vadd.f32 %v420, %v500
    %502 = vdwg.mxu0
    %503 = vmatpush.msra.mxu0 0.0
    %504 = vmatpush.msra.mxu0 0.0
    %505 = vmatpush.msra.mxu0 0.0
    %506 = vmatpush.msra.mxu0 0.0
    %507 = vmatpush.msra.mxu0 0.0
    %508 = vmatpush.msra.mxu0 0.0
    %509 = vmatpush.msra.mxu0 0.0
    %510 = vmatpush.msra.mxu0 0.0
    %511 = vmatpush.msra.mxu0 0.0
    %512 = vmatpush.msra.mxu0 0.0
    %513 = vmatpush.msra.mxu0 0.0
    %514 = vmatpush.msra.mxu0 0.0
    %515 = vmatpush.msra.mxu0 0.0
    %516 = vmatpush.msra.mxu0 %v441
    %517 = vmatpush.msra.mxu0 %v411
    %518 = vmatpush.msra.mxu0 %v407
    %519 = vmatmul.f32.gmra.mxu0 %v428
    %v520 = vpop.f32.mrf.mxu0
    %v521 = vadd.f32 %v421, %v520
    %522 = vdwg.mxu0
    %v523 = vmax.f32 %v461, 0.0
    %v524 = vmax.f32 %v481, 0.0
    %v525 = vmax.f32 %v501, 0.0
    %v526 = vmax.f32 %v521, 0.0
    %v527 = vld [vmem:[#allocation13] sm:$0xff]
    %v528 = vld [vmem:[#allocation13 + $0x8] sm:$0xff]
    %v529 = vld [vmem:[#allocation13 + $0x10] sm:$0xff]
    %v530 = vld [vmem:[#allocation13 + $0x18] sm:$0xff]
    %v531 = vld [vmem:[#allocation13 + $0x20] sm:$0xff]
    %v532 = vld [vmem:[#allocation13 + $0x28] sm:$0xff]
    %v533 = vld [vmem:[#allocation13 + $0x30] sm:$0xff]
    %v534 = vld [vmem:[#allocation13 + $0x38] sm:$0xff]
    %v535 = vld [vmem:[#allocation13 + $0x40] sm:$0xff]
    %v536 = vld [vmem:[#allocation13 + $0x48] sm:$0xff]
    %v537 = vld [vmem:[#allocation13 + $0x50] sm:$0xff]
    %v538 = vld [vmem:[#allocation13 + $0x58] sm:$0xff]
    %v539 = vld [vmem:[#allocation13 + $0x60] sm:$0xff]
    %v540 = vld [vmem:[#allocation13 + $0x68] sm:$0xff]
    %v541 = vld [vmem:[#allocation13 + $0x70] sm:$0xff]
    %v542 = vld [vmem:[#allocation13 + $0x78] sm:$0xff]
    %v543 = vld [vmem:[#allocation13 + $0x80] sm:$0xff]
    %v544 = vld [vmem:[#allocation13 + $0x88] sm:$0xff]
    %v545 = vld [vmem:[#allocation13 + $0x90] sm:$0xff]
    %v546 = vld [vmem:[#allocation13 + $0x98] sm:$0xff]
    %v547 = vld [vmem:[#allocation13 + $0xa0] sm:$0xff]
    %v548 = vld [vmem:[#allocation13 + $0xa8] sm:$0xff]
    %v549 = vld [vmem:[#allocation13 + $0xb0] sm:$0xff]
    %v550 = vld [vmem:[#allocation13 + $0xb8] sm:$0xff]
    %v551 = vld [vmem:[#allocation13 + $0xc0] sm:$0xff]
    %v552 = vld [vmem:[#allocation13 + $0xc8] sm:$0xff]
    %v553 = vld [vmem:[#allocation13 + $0xd0] sm:$0xff]
    %v554 = vld [vmem:[#allocation13 + $0xd8] sm:$0xff]
    %v555 = vld [vmem:[#allocation13 + $0xe0] sm:$0xff]
    %v556 = vld [vmem:[#allocation13 + $0xe8] sm:$0xff]
    %v557 = vld [vmem:[#allocation13 + $0xf0] sm:$0xff]
    %v558 = vld [vmem:[#allocation13 + $0xf8] sm:$0xff]
    %v559 = vld [vmem:[#allocation13 + $0x100] sm:$0xff]
    %v560 = vld [vmem:[#allocation13 + $0x108] sm:$0xff]
    %v561 = vld [vmem:[#allocation13 + $0x110] sm:$0xff]
    %v562 = vld [vmem:[#allocation13 + $0x118] sm:$0xff]
    %v563 = vld [vmem:[#allocation13 + $0x120] sm:$0xff]
    %v564 = vld [vmem:[#allocation13 + $0x128] sm:$0xff]
    %v565 = vld [vmem:[#allocation13 + $0x130] sm:$0xff]
    %v566 = vld [vmem:[#allocation13 + $0x138] sm:$0xff]
    %v567 = vld [vmem:[#allocation13 + $0x140] sm:$0xff]
    %v568 = vld [vmem:[#allocation13 + $0x148] sm:$0xff]
    %v569 = vld [vmem:[#allocation13 + $0x150] sm:$0xff]
    %v570 = vld [vmem:[#allocation13 + $0x158] sm:$0xff]
    %v571 = vld [vmem:[#allocation13 + $0x160] sm:$0xff]
    %v572 = vld [vmem:[#allocation13 + $0x168] sm:$0xff]
    %v573 = vld [vmem:[#allocation13 + $0x170] sm:$0xff]
    %v574 = vld [vmem:[#allocation13 + $0x178] sm:$0xff]
    %v575 = vld [vmem:[#allocation13 + $0x180] sm:$0xff]
    %v576 = vld [vmem:[#allocation13 + $0x188] sm:$0xff]
    %v577 = vld [vmem:[#allocation13 + $0x190] sm:$0xff]
    %v578 = vld [vmem:[#allocation13 + $0x198] sm:$0xff]
    %v579 = vld [vmem:[#allocation13 + $0x1a0] sm:$0xff]
    %v580 = vld [vmem:[#allocation13 + $0x1a8] sm:$0xff]
    %v581 = vld [vmem:[#allocation13 + $0x1b0] sm:$0xff]
    %v582 = vld [vmem:[#allocation13 + $0x1b8] sm:$0xff]
    %v583 = vld [vmem:[#allocation13 + $0x1c0] sm:$0xff]
    %v584 = vld [vmem:[#allocation13 + $0x1c8] sm:$0xff]
    %v585 = vld [vmem:[#allocation13 + $0x1d0] sm:$0xff]
    %v586 = vld [vmem:[#allocation13 + $0x1d8] sm:$0xff]
    %v587 = vld [vmem:[#allocation13 + $0x1e0] sm:$0xff]
    %v588 = vld [vmem:[#allocation13 + $0x1e8] sm:$0xff]
    %v589 = vld [vmem:[#allocation13 + $0x1f0] sm:$0xff]
    %v590 = vld [vmem:[#allocation13 + $0x1f8] sm:$0xff]
    %v591 = vld [vmem:[%s9] sm:$0x1]
    %v593 = vperm.slane %v591, 0
    %595 = vmatpush.msra.mxu0 %v542
    %596 = vmatpush.msra.mxu0 %v541
    %597 = vmatpush.msra.mxu0 %v540
    %598 = vmatpush.msra.mxu0 %v539
    %599 = vmatpush.msra.mxu0 %v538
    %600 = vmatpush.msra.mxu0 %v537
    %601 = vmatpush.msra.mxu0 %v536
    %602 = vmatpush.msra.mxu0 %v535
    %603 = vmatpush.msra.mxu0 %v534
    %604 = vmatpush.msra.mxu0 %v533
    %605 = vmatpush.msra.mxu0 %v532
    %606 = vmatpush.msra.mxu0 %v531
    %607 = vmatpush.msra.mxu0 %v530
    %608 = vmatpush.msra.mxu0 %v529
    %609 = vmatpush.msra.mxu0 %v528
    %610 = vmatpush.msra.mxu0 %v527
    %611 = vmatmul.f32.gmra.mxu0 %v523
    %v612 = vpop.f32.mrf.mxu0
    %v613 = vadd.f32 %v593, %v612
    %614 = vdwg.mxu0
    %615 = vmatpush.msra.mxu0 %v558
    %616 = vmatpush.msra.mxu0 %v557
    %617 = vmatpush.msra.mxu0 %v556
    %618 = vmatpush.msra.mxu0 %v555
    %619 = vmatpush.msra.mxu0 %v554
    %620 = vmatpush.msra.mxu0 %v553
    %621 = vmatpush.msra.mxu0 %v552
    %622 = vmatpush.msra.mxu0 %v551
    %623 = vmatpush.msra.mxu0 %v550
    %624 = vmatpush.msra.mxu0 %v549
    %625 = vmatpush.msra.mxu0 %v548
    %626 = vmatpush.msra.mxu0 %v547
    %627 = vmatpush.msra.mxu0 %v546
    %628 = vmatpush.msra.mxu0 %v545
    %629 = vmatpush.msra.mxu0 %v544
    %630 = vmatpush.msra.mxu0 %v543
    %631 = vmatmul.f32.gmra.mxu0 %v524
    %v632 = vpop.f32.mrf.mxu0
    %v633 = vadd.f32 %v613, %v632
    %634 = vdwg.mxu0
    %635 = vmatpush.msra.mxu0 %v574
    %636 = vmatpush.msra.mxu0 %v573
    %637 = vmatpush.msra.mxu0 %v572
    %638 = vmatpush.msra.mxu0 %v571
    %639 = vmatpush.msra.mxu0 %v570
    %640 = vmatpush.msra.mxu0 %v569
    %641 = vmatpush.msra.mxu0 %v568
    %642 = vmatpush.msra.mxu0 %v567
    %643 = vmatpush.msra.mxu0 %v566
    %644 = vmatpush.msra.mxu0 %v565
    %645 = vmatpush.msra.mxu0 %v564
    %646 = vmatpush.msra.mxu0 %v563
    %647 = vmatpush.msra.mxu0 %v562
    %648 = vmatpush.msra.mxu0 %v561
    %649 = vmatpush.msra.mxu0 %v560
    %650 = vmatpush.msra.mxu0 %v559
    %651 = vmatmul.f32.gmra.mxu0 %v525
    %v652 = vpop.f32.mrf.mxu0
    %v653 = vadd.f32 %v633, %v652
    %654 = vdwg.mxu0
    %655 = vmatpush.msra.mxu0 %v590
    %656 = vmatpush.msra.mxu0 %v589
    %657 = vmatpush.msra.mxu0 %v588
    %658 = vmatpush.msra.mxu0 %v587
    %659 = vmatpush.msra.mxu0 %v586
    %660 = vmatpush.msra.mxu0 %v585
    %661 = vmatpush.msra.mxu0 %v584
    %662 = vmatpush.msra.mxu0 %v583
    %663 = vmatpush.msra.mxu0 %v582
    %664 = vmatpush.msra.mxu0 %v581
    %665 = vmatpush.msra.mxu0 %v580
    %666 = vmatpush.msra.mxu0 %v579
    %667 = vmatpush.msra.mxu0 %v578
    %668 = vmatpush.msra.mxu0 %v577
    %669 = vmatpush.msra.mxu0 %v576
    %670 = vmatpush.msra.mxu0 %v575
    %671 = vmatmul.f32.gmra.mxu0 %v526
    %v672 = vpop.f32.mrf.mxu0
    %v673 = vadd.f32 %v653, %v672
    %674 = vdwg.mxu0
    %v675 = vmul.f32 %v673, 0.5
    %v676 = vtanh.pop %v675
    %v677 = vadd.f32 %v676, 1.0
    %v678 = vmul.f32 %v677, 0.5
    %v679 = vlaneseq
    %v680 = vand.u32 %v679, 127
    %vm681 = vcmp.lt.s32.totalorder %v680, 40
    %v682 = vsel %vm681, %v392, %v678
    %683 = vst [vmem:[#allocation14] sm:$0xff] %v682
    // Predicated region
    $region70: #{tpu_custom_call.1} parent=1 // pred_check
      _
    $region71: #{tpu_custom_call.1} parent=1 // pred_check_branch
      %685 = sbr.rel (0) target = $region73
    $region72: #{tpu_custom_call.1} parent=1 // pred_region
      %687 = vsyncadd [#allocation4], 0
      %s689 = sshll.u32 [#allocation14], 4
      %s690 = int_to_ptr.vmem [resolvable:$true] %s689
      %s691 = sshll.u32 %s10, 4
      %s692 = int_to_ptr.hbm [resolvable:$true] %s691
      %694 = dma.vmem_to_hbm [thread:$0]  %s690, 128, %s692, [#allocation4]
    $region73: #{tpu_custom_call.1} parent=1 // pred_fallthru
      _
    // Predicated region
    $region74: #{tpu_custom_call.1} parent=1 // pred_check
      _
    $region75: #{tpu_custom_call.1} parent=1 // pred_check_branch
      %696 = sbr.rel (0) target = $region77
    $region76: #{tpu_custom_call.1} parent=1 // pred_region
      %698 = dma.done [#allocation4], 128
    $region77: #{tpu_custom_call.1} parent=1 // pred_fallthru
      _
    %699 = vsyncpa [#allocation3], 1
    %700 = vsyncpa [#allocation6], 1
    %701 = vsyncpa [#allocation9], 1
    %702 = vsyncpa [#allocation12], 1
    %703 = vsyncpa [#allocation4], 1

</llo_original>
